<compile_context>
chip_gen: v5e
topology: v5e:2x2
jax: 0.10.0
libtpu: 0.0.40
codegen_flags: <defaults>
</compile_context>

<pallas_src>
import jax
import jax.numpy as jnp
from jax.experimental import pallas as pl
from jax.experimental.pallas import tpu as pltpu


def _round_up(a: int, b: int) -> int:
    return (a + b - 1) // b * b


def _normalize_rows(y):
    # F.normalize: y / max(||y||, 1e-12) == y * rsqrt(max(sum(y*y), 1e-24))
    sumsq = jnp.sum(y * y, axis=-1, keepdims=True)
    return y * jax.lax.rsqrt(jnp.maximum(sumsq, 1e-24))


def _to_latent_kernel_fused(x_ref, w_ref, o_ref):
    # Single K step: full contraction dim resident in VMEM; no accumulator.
    # x_ref: (tm, dim_pad), w_ref: (dim_pad, nl_pad) (K, N layout), o_ref: (tm, nl_pad)
    y = jnp.dot(x_ref[...], w_ref[...], preferred_element_type=jnp.float32)
    o_ref[...] = _normalize_rows(y).astype(o_ref.dtype)


def _to_latent_kernel_ktiled(x_ref, w_ref, o_ref, acc_ref):
    # x_ref: (tm, tk), w_ref: (tk, nl_pad), o_ref/acc_ref: (tm, nl_pad)
    k = pl.program_id(1)
    partial = jnp.dot(x_ref[...], w_ref[...], preferred_element_type=jnp.float32)

    @pl.when(k == 0)
    def _():
        acc_ref[...] = partial          # write-on-first-step: no zero-init pass

    @pl.when(k != 0)
    def _():
        acc_ref[...] += partial

    @pl.when(k == pl.num_programs(1) - 1)
    def _():
        o_ref[...] = _normalize_rows(acc_ref[...]).astype(o_ref.dtype)


def to_latent(x, weight, *, tm=512, tk=512, compute_dtype=None):
    """x: [B, S, dim]; weight: [dim_latent, dim] (PyTorch Linear layout)."""
    B, S, dim = x.shape
    dim_latent, dim_w = weight.shape
    assert dim_w == dim
    M = B * S

    out_dtype = x.dtype
    op_dtype = jnp.dtype(compute_dtype) if compute_dtype is not None else jnp.dtype(x.dtype)
    op_item = op_dtype.itemsize
    out_item = jnp.dtype(out_dtype).itemsize

    # Sub-32-bit dtypes pack along sublanes: min second-minor tile = 32/itemsize.
    sublane = max(8, 32 // op_item, 32 // out_item)

    dim_pad = _round_up(dim, 128)
    nl_pad = _round_up(dim_latent, 128)
    # v6e/v7x MXUs are 2x256x256: prefer 256-aligned N for non-tiny latents.
    if nl_pad > 128:
        nl_pad = _round_up(nl_pad, 256)

    # --- M tiling ------------------------------------------------------------
    tm_base = min(tm, _round_up(M, sublane))
    # Prefer >= 2 M tiles so megacore / v7x's two TensorCores both get work.
    if _round_up(M, tm_base) == tm_base and M > sublane:
        tm_base = max(sublane, _round_up((M + 1) // 2, sublane))

    # --- Generation-aware VMEM budget ----------------------------------------
    try:
        vmem_cap = int(pltpu.get_tpu_info().vmem_capacity_bytes)
    except Exception:
        vmem_cap = 64 << 20                       # v7x-safe fallback
    budget = int(vmem_cap * 0.6)

    def vmem_needed(tm_, tk_):
        return (2 * tm_ * tk_ * op_item           # double-buffered x tiles
                + 2 * tk_ * nl_pad * op_item      # (double-buffered) weight tiles
                + 2 * tm_ * nl_pad * out_item     # double-buffered out tiles
                + tm_ * nl_pad * 4)               # f32 accumulator / dot result

    # --- K tiling: collapse K whenever the padded weight fits the budget -----
    tm_floor_collapsed = max(sublane, min(tm_base, 128))
    tm_c = tm_base
    while tm_c > tm_floor_collapsed and vmem_needed(tm_c, dim_pad) > budget:
        tm_c = max(tm_floor_collapsed, _round_up(tm_c // 2, sublane))

    if vmem_needed(tm_c, dim_pad) <= budget:
        k_tiled = False
        tm_eff = tm_c
        tk_eff = dim_pad
    else:
        # Weight too large to keep resident: tile the contraction axis.
        k_tiled = True
        tm_eff = tm_base
        tk_eff = min(_round_up(min(tk, dim_pad), 128), dim_pad)
        while (vmem_needed(tm_eff, tk_eff) > budget
               and (tm_eff > sublane or tk_eff > 128)):
            # Halve whichever axis currently contributes more VMEM.
            x_out_acc = tm_eff * (2 * tk_eff * op_item + 2 * nl_pad * out_item + nl_pad * 4)
            w_bytes = 2 * tk_eff * nl_pad * op_item
            if (w_bytes >= x_out_acc and tk_eff > 128) or tm_eff <= sublane:
                tk_eff = max(128, _round_up(tk_eff // 2, 128))
            else:
                tm_eff = max(sublane, _round_up(tm_eff // 2, sublane))
        dim_pad = _round_up(_round_up(dim, 128), tk_eff)
        # TODO(synk): for nl_pad >= ~2048 on v7x, add an N grid axis with a
        # two-pass normalization instead of keeping the full latent width resident.

    m_pad = _round_up(M, tm_eff)
    num_m = m_pad // tm_eff
    num_k = dim_pad // tk_eff

    # --- HBM-side prep: one-time weight transpose, cast + pad only if needed --
    x2 = x.reshape(M, dim)
    w_t = weight.T                                 # [dim, dim_latent]: (K, N) layout
    if compute_dtype is not None and op_dtype != x.dtype:
        x2 = x2.astype(op_dtype)
    if compute_dtype is not None and op_dtype != weight.dtype:
        w_t = w_t.astype(op_dtype)
    if (m_pad, dim_pad) != (M, dim):
        x2 = jnp.pad(x2, ((0, m_pad - M), (0, dim_pad - dim)))
    if (dim_pad, nl_pad) != (dim, dim_latent):
        w_t = jnp.pad(w_t, ((0, dim_pad - dim), (0, nl_pad - dim_latent)))

    vmem_limit = min(int(vmem_needed(tm_eff, tk_eff) * 1.5) + (4 << 20),
                     vmem_cap - (4 << 20))
    vmem_limit = max(vmem_limit, min(32 << 20, vmem_cap - (4 << 20)))

    cost = pl.CostEstimate(
        flops=2 * m_pad * dim_pad * nl_pad,
        transcendentals=m_pad,                     # one rsqrt per row
        bytes_accessed=(m_pad * dim_pad * op_item
                        + dim_pad * nl_pad * op_item * (num_m if k_tiled else 1)
                        + m_pad * nl_pad * out_item),
    )

    if not k_tiled:
        grid_spec = pltpu.PrefetchScalarGridSpec(
            num_scalar_prefetch=0,
            grid=(num_m,),
            in_specs=[
                pl.BlockSpec((tm_eff, dim_pad), lambda i: (i, 0)),
                pl.BlockSpec((dim_pad, nl_pad), lambda i: (0, 0)),  # constant -> no re-DMA
            ],
            out_specs=pl.BlockSpec((tm_eff, nl_pad), lambda i: (i, 0)),
        )
        kernel = _to_latent_kernel_fused
        dims = ("parallel",)
    else:
        grid_spec = pltpu.PrefetchScalarGridSpec(
            num_scalar_prefetch=0,
            grid=(num_m, num_k),
            in_specs=[
                pl.BlockSpec((tm_eff, tk_eff), lambda i, k: (i, k)),
                pl.BlockSpec((tk_eff, nl_pad), lambda i, k: (k, 0)),  # (K, N) tile, no XLU
            ],
            out_specs=pl.BlockSpec((tm_eff, nl_pad), lambda i, k: (i, 0)),
            scratch_shapes=[pltpu.VMEM((tm_eff, nl_pad), jnp.float32)],
        )
        kernel = _to_latent_kernel_ktiled
        dims = ("parallel", "arbitrary")

    out2 = pl.pallas_call(
        kernel,
        out_shape=jax.ShapeDtypeStruct((m_pad, nl_pad), out_dtype),
        grid_spec=grid_spec,
        compiler_params=pltpu.CompilerParams(
            dimension_semantics=dims,
            vmem_limit_bytes=vmem_limit,
        ),
        cost_estimate=cost,
    )(x2, w_t)

    return out2[:M, :dim_latent].reshape(B, S, dim_latent)


if __name__ == "__main__":
    B, S, dim, dim_latent = 2, 8, 32, 16

    key = jax.random.PRNGKey(0)
    kx, kw = jax.random.split(key)

    x = jax.random.normal(kx, (B, S, dim), dtype=jnp.float32)
    # Deterministic init of the Linear weight (PyTorch layout: [out, in]).
    bound = 1.0 / (dim ** 0.5)
    weight = jax.random.uniform(
        kw, (dim_latent, dim), minval=-bound, maxval=bound, dtype=jnp.float32
    )

    out = jax.block_until_ready(to_latent(x, weight))

    # Reference check in plain JAX.
    y_ref = jnp.einsum("bsd,ld->bsl", x, weight)
    ref = y_ref / jnp.maximum(
        jnp.linalg.norm(y_ref, axis=-1, keepdims=True), 1e-12
    )
    assert out.shape == (B, S, dim_latent)
    err = float(jnp.max(jnp.abs(out - ref)))
    assert jnp.allclose(out, ref, atol=1e-4, rtol=1e-4), err

    print("KERNEL_OK")
</pallas_src>

<mosaic_0001>
module attributes {stable_mosaic.version = 11 : i64} {
  func.func @_to_latent_kernel_fused(%arg0: i32, %arg1: memref<8x128xf32, #tpu.memory_space<vmem>>, %arg2: memref<128x128xf32, #tpu.memory_space<vmem>>, %arg3: memref<8x128xf32, #tpu.memory_space<vmem>>) attributes {dimension_semantics = [#tpu.dimension_semantics<parallel>], iteration_bounds = array<i64: 2>, scalar_prefetch = 0 : i64, scratch_operands = 0 : i64, tpu.core_type = #tpu.core_type<tc>, window_params = [{transform_indices = @transform_0, window_bounds = array<i64: 8, 128>}, {pipeline_mode = #tpu.pipeline_mode<synchronous>, transform_indices = @transform_1, window_bounds = array<i64: 128, 128>}, {transform_indices = @transform_2, window_bounds = array<i64: 8, 128>}]} {
    %c0 = arith.constant 0 : index
    %c0_0 = arith.constant 0 : index
    %0 = vector.load %arg1[%c0, %c0_0] : memref<8x128xf32, #tpu.memory_space<vmem>>, vector<8x128xf32>
    %c0_1 = arith.constant 0 : index
    %c0_2 = arith.constant 0 : index
    %1 = vector.load %arg2[%c0_1, %c0_2] : memref<128x128xf32, #tpu.memory_space<vmem>>, vector<128x128xf32>
    %cst = arith.constant dense<0.000000e+00> : vector<8x128xf32>
    %2 = tpu.matmul %0, %1, %cst {dimension_numbers = #tpu.dot_dimension_numbers<[1], [0], [0], [1], [0, 0, 1, 1], [], []>} : vector<8x128xf32>, vector<128x128xf32>, vector<8x128xf32> -> vector<8x128xf32>
    %3 = arith.mulf %2, %2 : vector<8x128xf32>
    %cst_3 = arith.constant dense<0.000000e+00> : vector<8xf32>
    %4 = vector.multi_reduction <add>, %3, %cst_3 [1] : vector<8x128xf32> to vector<8xf32>
    %5 = vector.shape_cast %4 : vector<8xf32> to vector<8x1xf32>
    %cst_4 = arith.constant 1.000000e-24 : f32
    %6 = vector.broadcast %cst_4 : f32 to vector<8x1xf32>
    %7 = arith.maximumf %5, %6 : vector<8x1xf32>
    %8 = math.rsqrt %7 : vector<8x1xf32>
    %9 = vector.broadcast %8 : vector<8x1xf32> to vector<8x128xf32>
    %10 = arith.mulf %2, %9 : vector<8x128xf32>
    %c0_5 = arith.constant 0 : index
    %c0_6 = arith.constant 0 : index
    %11 = vector.load %arg3[%c0_5, %c0_6] : memref<8x128xf32, #tpu.memory_space<vmem>>, vector<8x128xf32>
    tpu.vector_store %arg3[%c0_5, %c0_6], %10 {strides = array<i32>} : memref<8x128xf32, #tpu.memory_space<vmem>>, vector<8x128xf32>,
    return
  }
  func.func @transform_0(%arg0: i32) -> (i32, i32) {
    %c0_i32 = arith.constant 0 : i32
    %c0_i32_0 = arith.constant 0 : i32
    return %arg0, %c0_i32 : i32, i32
  }
  func.func @transform_1(%arg0: i32) -> (i32, i32) {
    %c0_i32 = arith.constant 0 : i32
    %c0_i32_0 = arith.constant 0 : i32
    %c0_i32_1 = arith.constant 0 : i32
    return %c0_i32, %c0_i32_0 : i32, i32
  }
  func.func @transform_2(%arg0: i32) -> (i32, i32) {
    %c0_i32 = arith.constant 0 : i32
    %c0_i32_0 = arith.constant 0 : i32
    return %arg0, %c0_i32 : i32, i32
  }
}

</mosaic_0001>

<llo_original>
// kernel: tpu_custom_call.1
$region0: #{tpu_custom_call.1}
  #allocation0 [shape = 'u32[]', space=smem, size = 0x4, offset = 0x4, fixed_abs, tag = 'smem constant byte address 0x4 - core index']
  #allocation1 [shape = 'u32[72,128]{1,0:T(1,128)}', space=vmem, size = 0x9000, scoped, tag = 'internal scratch']
  %s0 = inlined_call_operand.hbm [shape: f32[16,128], index: 0, kind: input, shape index: {}]
  %s1 = inlined_call_operand.hbm [shape: f32[128,128], index: 1, kind: input, shape index: {}]
  %s2 = inlined_call_operand.hbm [shape: f32[16,128], index: 2, kind: output, shape index: {}]
  %s3 = sld [smem:[#allocation0]]
  $region49: #{tpu_custom_call.1} parent=0
    _
  %s5 = ssub.s32 1, %s3
  %s6 = scalar_select 0, %s5, %s3
  $region1: #{tpu_custom_call.1} parent=0
    #allocation2 [shape = 'u8[8192]{0}', space=vmem, size = 0x2000, scoped, tag = 'input window, operand 0']
    #allocation3 [shape = 's32[2]{0}', space=sflag, size = 0x8, scoped, tag = 'scoped memory for tpu_custom_call.1']
    #allocation4 [shape = 's32[2]{0}', space=sflag, size = 0x8, scoped, tag = 'scoped memory for tpu_custom_call.1']
    #allocation5 [shape = 'u8[65536]{0}', space=vmem, size = 0x10000, scoped, tag = 'input window, operand 1, single buffered']
    #allocation6 [shape = 's32[1]{0}', space=sflag, size = 0x4, scoped, tag = 'scoped memory for tpu_custom_call.1']
    #allocation7 [shape = 'u8[8192]{0}', space=vmem, size = 0x2000, scoped, tag = 'output window, operand 0']
    %7 = vsyncpa [#allocation3], 0
    %s8 = scalar_lea.sflag [#allocation3], 1
    %9 = vsyncpa %s8, 0
    %10 = vsyncpa [#allocation6], 0
    %11 = vsyncpa [#allocation4], 0
    %s12 = scalar_lea.sflag [#allocation4], 1
    %13 = vsyncpa %s12, 0
    loop: start=0, step=1, limit=4
    $region2: #{tpu_custom_call.1} parent=1 // loop_pre_header
      _
    $region3: #{tpu_custom_call.1} parent=1 // loop_header
      %s15 = sphi 0, %s19
      %p16 = scmp.ge.s32.totalorder %s15, 4
      %s25 = sphi 0, %s27
      %s28 = sphi 0, %s25
      %s29 = sphi 0, %s28
      %s45 = sphi 0, %s29
      %s49 = sphi 0, %s49
      %s51 = sphi 0, %s49
      %s52 = sphi 0, %s51
      %s66 = sphi 0, %s52
      %s72 = sphi 0, %s74
      %s75 = sphi 0, %s72
      %s76 = sphi 0, %s75
      %s92 = sphi 0, %s76
    $region4: #{tpu_custom_call.1} parent=1 // loop_header_branch
      %18 = sbr.rel (%p16) target = $region8
    $region5: #{tpu_custom_call.1} parent=1 // loop_body
      %s20 = ssub.s32 %s15, 1
      %s21 = ssub.s32 %s15, 2
      %s22 = sadd.s32 %s15, 1
      %s23 = ssub.s32 %s15, %s22
      %p24 = scmp.eq.s32.totalorder %s23, 0
      %s26 = sadd.s32 %s25, 1
      %s27 = scalar_select %p24, %s25, %s26
      %p30 = pneg %p24
      %p31 = scmp.eq.s32.totalorder %s15, 1
      %p32 = por %p30, %p31
      %p33 = scmp.ne.s32.totalorder %s25, %s28
      %p34 = scmp.eq.s32.totalorder %s15, 0
      %p35 = por %p33, %p34
      %p36 = scmp.ne.s32.totalorder %s25, %s28
      %p37 = scmp.eq.s32.totalorder %s20, 1
      %p38 = por %p36, %p37
      %p39 = scmp.ne.s32.totalorder %s28, %s29
      %p40 = scmp.eq.s32.totalorder %s20, 0
      %p41 = por %p39, %p40
      %p42 = scmp.ne.s32.totalorder %s28, %s29
      %p43 = scmp.eq.s32.totalorder %s21, 1
      %p44 = por %p42, %p43
      %p46 = scmp.ne.s32.totalorder %s29, %s45
      %p47 = scmp.eq.s32.totalorder %s21, 0
      %p48 = por %p46, %p47
      %s50 = sadd.s32 %s49, 1
      %p53 = scmp.eq.s32.totalorder %s15, 1
      %p54 = scmp.ne.s32.totalorder %s49, %s51
      %p55 = scmp.eq.s32.totalorder %s15, 0
      %p56 = por %p54, %p55
      %p57 = scmp.ne.s32.totalorder %s49, %s51
      %p58 = scmp.eq.s32.totalorder %s20, 1
      %p59 = por %p57, %p58
      %p60 = scmp.ne.s32.totalorder %s51, %s52
      %p61 = scmp.eq.s32.totalorder %s20, 0
      %p62 = por %p60, %p61
      %p63 = scmp.ne.s32.totalorder %s51, %s52
      %p64 = scmp.eq.s32.totalorder %s21, 1
      %p65 = por %p63, %p64
      %p67 = scmp.ne.s32.totalorder %s52, %s66
      %p68 = scmp.eq.s32.totalorder %s21, 0
      %p69 = por %p67, %p68
      %s70 = ssub.s32 %s15, %s22
      %p71 = scmp.eq.s32.totalorder %s70, 0
      %s73 = sadd.s32 %s72, 1
      %s74 = scalar_select %p71, %s72, %s73
      %p77 = pneg %p71
      %p78 = scmp.eq.s32.totalorder %s15, 1
      %p79 = por %p77, %p78
      %p80 = scmp.ne.s32.totalorder %s72, %s75
      %p81 = scmp.eq.s32.totalorder %s15, 0
      %p82 = por %p80, %p81
      %p83 = scmp.ne.s32.totalorder %s72, %s75
      %p84 = scmp.eq.s32.totalorder %s20, 1
      %p85 = por %p83, %p84
      %p86 = scmp.ne.s32.totalorder %s75, %s76
      %p87 = scmp.eq.s32.totalorder %s20, 0
      %p88 = por %p86, %p87
      %p89 = scmp.ne.s32.totalorder %s75, %s76
      %p90 = scmp.eq.s32.totalorder %s21, 1
      %p91 = por %p89, %p90
      %p93 = scmp.ne.s32.totalorder %s76, %s92
      %p94 = scmp.eq.s32.totalorder %s21, 0
      %p95 = por %p93, %p94
      %p96 = scmp.le.s32.totalorder 1, %s15
      %p97 = scmp.lt.s32.totalorder %s15, 3
      %p98 = pnand %p96, %p97
      %p99 = pneg %p98
      // Predicated region
      $region9: #{tpu_custom_call.1} parent=5 // pred_check
        _
      $region10: #{tpu_custom_call.1} parent=5 // pred_check_branch
        %101 = sbr.rel (%p98) target = $region12
      $region11: #{tpu_custom_call.1} parent=5 // pred_region
        %s102 = ssub.s32 %s15, 1
        // Predicated region
        $region13: #{tpu_custom_call.1} parent=11 // pred_check
          %p103 = pneg %p62
        $region14: #{tpu_custom_call.1} parent=11 // pred_check_branch
          %105 = sbr.rel (%p103) target = $region16
        $region15: #{tpu_custom_call.1} parent=11 // pred_region
          %107 = vsyncadd [#allocation6], 0
          %s108 = sshll.u32 %s1, 4
          %s109 = int_to_ptr.hbm [resolvable:$true] %s108
          %s110 = sshll.u32 [#allocation5], 4
          %s111 = int_to_ptr.vmem [resolvable:$true] %s110
          %116 = dma.hbm_to_vmem [thread:$0]  %s109, 2048, %s111, [#allocation6], 128, 128, 8
        $region16: #{tpu_custom_call.1} parent=11 // pred_fallthru
          _
      $region12: #{tpu_custom_call.1} parent=5 // pred_fallthru
        _
      %p117 = scmp.lt.s32.totalorder %s15, 2
      // Predicated region
      $region17: #{tpu_custom_call.1} parent=5 // pred_check
        %p118 = pneg %p117
      $region18: #{tpu_custom_call.1} parent=5 // pred_check_branch
        %120 = sbr.rel (%p118) target = $region20
      $region19: #{tpu_custom_call.1} parent=5 // pred_region
        // Predicated region
        $region21: #{tpu_custom_call.1} parent=19 // pred_check
          %p121 = pneg %p35
        $region22: #{tpu_custom_call.1} parent=19 // pred_check_branch
          %123 = sbr.rel (%p121) target = $region24
        $region23: #{tpu_custom_call.1} parent=19 // pred_region
          %s124 = sand.u32 %s25, 1
          %s125 = scalar_lea.sflag [#allocation3], %s124
          %s126 = sand.u32 %s25, 1
          %s127 = smul.addr %s126, 8
          %s128 = scalar_lea.vmem [#allocation2], %s127
          %130 = vsyncadd %s125, 0
          %s131 = smul.addr %s15, 8
          %s132 = scalar_lea.hbm %s0, %s131
          %s134 = sshll.u32 %s132, 4
          %s135 = int_to_ptr.hbm [resolvable:$true] %s134
          %s136 = sshll.u32 %s128, 4
          %s137 = int_to_ptr.vmem [resolvable:$true] %s136
          %139 = dma.hbm_to_vmem [thread:$0]  %s135, 128, %s137, %s125
        $region24: #{tpu_custom_call.1} parent=19 // pred_fallthru
          _
      $region20: #{tpu_custom_call.1} parent=5 // pred_fallthru
        _
      %p140 = scmp.le.s32.totalorder 1, %s15
      %p141 = scmp.lt.s32.totalorder %s15, 3
      %p142 = pnand %p140, %p141
      %p143 = pneg %p142
      // Predicated region
      $region25: #{tpu_custom_call.1} parent=5 // pred_check
        _
      $region26: #{tpu_custom_call.1} parent=5 // pred_check_branch
        %145 = sbr.rel (%p142) target = $region28
      $region27: #{tpu_custom_call.1} parent=5 // pred_region
        %s146 = ssub.s32 %s15, 1
        %s147 = sand.u32 %s28, 1
        %s148 = scalar_lea.sflag [#allocation3], %s147
        %s149 = sand.u32 %s28, 1
        %s150 = smul.addr %s149, 8
        %s151 = scalar_lea.vmem [#allocation2], %s150
        // Predicated region
        $region29: #{tpu_custom_call.1} parent=27 // pred_check
          %p152 = pneg %p41
        $region30: #{tpu_custom_call.1} parent=27 // pred_check_branch
          %154 = sbr.rel (%p152) target = $region32
        $region31: #{tpu_custom_call.1} parent=27 // pred_region
          %156 = dma.done %s148, 128
        $region32: #{tpu_custom_call.1} parent=27 // pred_fallthru
          _
        // Predicated region
        $region33: #{tpu_custom_call.1} parent=27 // pred_check
          %p157 = pneg %p62
        $region34: #{tpu_custom_call.1} parent=27 // pred_check_branch
          %159 = sbr.rel (%p157) target = $region36
        $region35: #{tpu_custom_call.1} parent=27 // pred_region
          %161 = dma.done [#allocation6], 2048
        $region36: #{tpu_custom_call.1} parent=27 // pred_fallthru
          _
        %s162 = sand.u32 %s28, 1
        %s163 = scalar_lea.sflag [#allocation3], %s162
        %s164 = sand.u32 %s28, 1
        %s165 = smul.addr %s164, 8
        %s166 = scalar_lea.vmem [#allocation2], %s165
        %p167 = pneg %p41
        %p168 = pneg %p38
        %p169 = pneg %p62
        %p170 = pneg %p59
        %p171 = pneg %p88
        %p172 = pneg %p85
        %s173 = sand.u32 %s75, 1
        %s174 = scalar_lea.sflag [#allocation4], %s173
        %s175 = sand.u32 %s75, 1
        %s176 = smul.addr %s175, 8
        %s177 = scalar_lea.vmem [#allocation7], %s176
        %v178 = vld [vmem:[%s151] sm:$0xff]
        %v179 = vld [vmem:[#allocation5] sm:$0xff]
        %v180 = vld [vmem:[#allocation5 + $0x8] sm:$0xff]
        %v181 = vld [vmem:[#allocation5 + $0x10] sm:$0xff]
        %v182 = vld [vmem:[#allocation5 + $0x18] sm:$0xff]
        %v183 = vld [vmem:[#allocation5 + $0x20] sm:$0xff]
        %v184 = vld [vmem:[#allocation5 + $0x28] sm:$0xff]
        %v185 = vld [vmem:[#allocation5 + $0x30] sm:$0xff]
        %v186 = vld [vmem:[#allocation5 + $0x38] sm:$0xff]
        %v187 = vld [vmem:[#allocation5 + $0x40] sm:$0xff]
        %v188 = vld [vmem:[#allocation5 + $0x48] sm:$0xff]
        %v189 = vld [vmem:[#allocation5 + $0x50] sm:$0xff]
        %v190 = vld [vmem:[#allocation5 + $0x58] sm:$0xff]
        %v191 = vld [vmem:[#allocation5 + $0x60] sm:$0xff]
        %v192 = vld [vmem:[#allocation5 + $0x68] sm:$0xff]
        %v193 = vld [vmem:[#allocation5 + $0x70] sm:$0xff]
        %v194 = vld [vmem:[#allocation5 + $0x78] sm:$0xff]
        %195 = vmatpush.msra.mxu0 %v194
        %196 = vmatpush.msra.mxu0 %v193
        %197 = vmatpush.msra.mxu0 %v192
        %198 = vmatpush.msra.mxu0 %v191
        %199 = vmatpush.msra.mxu0 %v190
        %200 = vmatpush.msra.mxu0 %v189
        %201 = vmatpush.msra.mxu0 %v188
        %202 = vmatpush.msra.mxu0 %v187
        %203 = vmatpush.msra.mxu0 %v186
        %204 = vmatpush.msra.mxu0 %v185
        %205 = vmatpush.msra.mxu0 %v184
        %206 = vmatpush.msra.mxu0 %v183
        %207 = vmatpush.msra.mxu0 %v182
        %208 = vmatpush.msra.mxu0 %v181
        %209 = vmatpush.msra.mxu0 %v180
        %210 = vmatpush.msra.mxu0 %v179
        %211 = vmatmul.f32.gmra.mxu0 %v178
        %v212 = vpop.f32.mrf.mxu0
        %v213 = vadd.f32 0.0, %v212
        %214 = vdwg.mxu0
        %v215 = vmul.f32 %v213, %v213
        %216 = vadd.xlane.f32.xlu0 %v215
        %v217 = vpop.xlane.xlu0 %216
        %v218 = vmax.f32 %v217, 1e-24
        %v219 = vrsqrt.pop %v218
        %v220 = vmul.f32 %v219, %v218
        %v221 = vmul.f32 %v220, %v219
        %v222 = vmul.f32 0.5, %v221
        %v223 = vsub.f32 1.5, %v222
        %v224 = vmul.f32 %v219, %v223
        %vm225 = vweird.f32 %v218
        %vm226 = vweird.f32 %v219
        %vm227 = vmor %vm225, %vm226
        %v228 = vsel %vm227, %v219, %v224
        %v229 = vmul.f32 %v213, %v228
        %230 = vst [vmem:[%s177] sm:$0xff] %v229
        %s231 = sand.u32 %s75, 1
        %s232 = scalar_lea.sflag [#allocation4], %s231
        %s233 = sand.u32 %s75, 1
        %s234 = smul.addr %s233, 8
        %s235 = scalar_lea.vmem [#allocation7], %s234
        // Predicated region
        $region37: #{tpu_custom_call.1} parent=27 // pred_check
          %p236 = pneg %p85
        $region38: #{tpu_custom_call.1} parent=27 // pred_check_branch
          %238 = sbr.rel (%p236) target = $region40
        $region39: #{tpu_custom_call.1} parent=27 // pred_region
          %240 = vsyncadd %s232, 0
          %s241 = smul.addr %s20, 8
          %s242 = scalar_lea.hbm %s2, %s241
          %s244 = sshll.u32 %s235, 4
          %s245 = int_to_ptr.vmem [resolvable:$true] %s244
          %s246 = sshll.u32 %s242, 4
          %s247 = int_to_ptr.hbm [resolvable:$true] %s246
          %249 = dma.vmem_to_hbm [thread:$0]  %s245, 128, %s247, %s232
        $region40: #{tpu_custom_call.1} parent=27 // pred_fallthru
          _
      $region28: #{tpu_custom_call.1} parent=5 // pred_fallthru
        _
      %p250 = scmp.le.s32.totalorder 2, %s15
      // Predicated region
      $region41: #{tpu_custom_call.1} parent=5 // pred_check
        %p251 = pneg %p250
      $region42: #{tpu_custom_call.1} parent=5 // pred_check_branch
        %253 = sbr.rel (%p251) target = $region44
      $region43: #{tpu_custom_call.1} parent=5 // pred_region
        %s254 = ssub.s32 %s15, 2
        // Predicated region
        $region45: #{tpu_custom_call.1} parent=43 // pred_check
          %p255 = pneg %p91
        $region46: #{tpu_custom_call.1} parent=43 // pred_check_branch
          %257 = sbr.rel (%p255) target = $region48
        $region47: #{tpu_custom_call.1} parent=43 // pred_region
          %s258 = sand.u32 %s76, 1
          %s259 = scalar_lea.sflag [#allocation4], %s258
          %s260 = sand.u32 %s76, 1
          %s261 = smul.addr %s260, 8
          %s262 = scalar_lea.vmem [#allocation7], %s261
          %264 = dma.done %s259, 128
        $region48: #{tpu_custom_call.1} parent=43 // pred_fallthru
          _
      $region44: #{tpu_custom_call.1} parent=5 // pred_fallthru
        _
    $region6: #{tpu_custom_call.1} parent=1 // loop_footer
      %s19 = sadd.s32 1, %s15
    $region7: #{tpu_custom_call.1} parent=1 // loop_footer_branch
      %14 = sbr.rel target = $region3
    $region8: #{tpu_custom_call.1} parent=1 // loop_exit
      _
    %265 = vsyncpa [#allocation3], 1
    %s266 = scalar_lea.sflag [#allocation3], 1
    %267 = vsyncpa %s266, 1
    %268 = vsyncpa [#allocation6], 1
    %269 = vsyncpa [#allocation4], 1
    %s270 = scalar_lea.sflag [#allocation4], 1
    %271 = vsyncpa %s270, 1

</llo_original>
